<compile_context>
chip_gen: v6e
topology: v6e:2x2x1
jax: 0.10.0
libtpu: 0.0.40
codegen_flags: <defaults>
</compile_context>

<pallas_src>
import functools
import math

import jax
import jax.numpy as jnp
from jax.experimental import pallas as pl
from jax.experimental.pallas import tpu as pltpu

BN_EPS = 1e-5
LANE = 128            # vreg lane width: feature dims padded to multiples of this
SUBLANE = 8           # f32 sublane width: batch tiles padded to multiples of this
TB_MAX = 512          # max batch-tile rows (raised per review for v5e/v6e)
FUSED_MAX_ROWS = 256  # batch <= this -> single fused pallas_call


# ---------------------------------------------------------------------------
# Small helpers
# ---------------------------------------------------------------------------
def _round_up(x, m):
    return ((x + m - 1) // m) * m


def _cdiv(a, b):
    return -(-a // b)


def _pad2(a, rows, cols, dtype=None):
    if dtype is not None:
        a = a.astype(dtype)
    return jnp.pad(a, ((0, rows - a.shape[0]), (0, cols - a.shape[1])))


def _nbytes(shape, dtype):
    return math.prod(shape) * jnp.dtype(dtype).itemsize


def _vmem_limit_bytes(resident_bytes, streamed_bytes=0):
    # resident blocks are single-buffered; streamed tiles are double-buffered.
    est = int((resident_bytes + 2 * streamed_bytes) * 1.5) + (2 << 20)
    return max(8 << 20, min(est, 64 << 20))


def _const_spec(shape):
    """Resident block (constant index_map): single-buffered to halve its VMEM
    footprint (matters for v7x's 64 MiB VMEM at large sze)."""
    try:
        return pl.BlockSpec(shape, lambda i: (0,) * len(shape),
                            pipeline_mode=pl.Buffered(buffer_count=1))
    except TypeError:  # older jax without pipeline_mode: fall back, still correct
        return pl.BlockSpec(shape, lambda i: (0,) * len(shape))


def _derive_tb(batch, tb_max=TB_MAX, min_tiles=2):
    """Balanced batch tiles: >= 2 tiles (so both v7x TensorCores get work),
    tile count rounded to a multiple of 2, rows rounded to the sublane (8)."""
    n = max(min_tiles, _cdiv(batch, tb_max))
    n = _round_up(n, 2)
    tb = _round_up(_cdiv(batch, n), SUBLANE)
    n_tiles = _cdiv(batch, tb)
    return tb, n_tiles


# ---------------------------------------------------------------------------
# One-time parameter preparation (hoisted out of the per-call path)
# ---------------------------------------------------------------------------
def prepare_params(params):
    """Pad feature dims to multiples of 128 and pre-cast matmul weights to bf16.
    Call once and reuse; every forward then starts directly with the kernels."""
    w1, b1, w2, b2, gamma, beta, w3, b3 = params
    numm, sze = w1.shape
    classes = w3.shape[1]
    numm_p = _round_up(numm, LANE)
    sze_p = _round_up(sze, LANE)
    classes_p = _round_up(classes, LANE)
    return (
        _pad2(w1, numm_p, sze_p, jnp.bfloat16),
        _pad2(b1, 1, sze_p),
        _pad2(w2, sze_p, sze_p, jnp.bfloat16),
        _pad2(b2, 1, sze_p),
        # gamma/beta zero-padded on purpose: padded feature columns then get
        # scale = 0 * inv_std = 0 and shift = 0, staying finite and zero.
        _pad2(gamma, 1, sze_p),
        _pad2(beta, 1, sze_p),
        _pad2(w3, sze_p, classes_p, jnp.bfloat16),
        _pad2(b3, 1, classes_p),
    )


# ---------------------------------------------------------------------------
# Kernels
# ---------------------------------------------------------------------------
def _fused_kernel(x_ref, w1_ref, b1_ref, w2_ref, b2_ref, gamma_ref, beta_ref,
                  w3_ref, b3_ref, out_ref, *, valid_rows):
    """Whole model in one kernel (single batch tile). BN statistics are computed
    in-kernel over the valid rows (padded rows are masked out)."""
    h1 = jnp.dot(x_ref[...], w1_ref[...], preferred_element_type=jnp.float32)
    h1 = jnp.maximum(h1 + b1_ref[...], 0.0)
    h2 = jnp.dot(h1.astype(jnp.bfloat16), w2_ref[...],
                 preferred_element_type=jnp.float32) + b2_ref[...]

    rows = jax.lax.broadcasted_iota(jnp.int32, h2.shape, 0)
    mask = (rows < valid_rows).astype(jnp.float32)
    inv_n = 1.0 / valid_rows
    mean = jnp.sum(h2 * mask, axis=0, keepdims=True) * inv_n
    centered = (h2 - mean) * mask
    var = jnp.sum(centered * centered, axis=0, keepdims=True) * inv_n

    scale = gamma_ref[...] * jax.lax.rsqrt(var + BN_EPS)
    shift = beta_ref[...] - mean * scale
    h3 = jnp.maximum(h2 * scale + shift, 0.0)

    out = jnp.dot(h3.astype(jnp.bfloat16), w3_ref[...],
                  preferred_element_type=jnp.float32)
    out_ref[...] = out + b3_ref[...]


def _stage1_kernel(x_ref, w1_ref, b1_ref, w2_ref, b2_ref,
                   h2_ref, sum_ref, sq_ref, *, valid_rows, tile_rows):
    """h2 = relu(x@w1+b1)@w2 + b2 for one batch tile; h2 written back in bf16
    plus masked per-tile sum / sum-of-squares for full-batch BN statistics."""
    h1 = jnp.dot(x_ref[...], w1_ref[...], preferred_element_type=jnp.float32)
    h1 = jnp.maximum(h1 + b1_ref[...], 0.0)
    h2 = jnp.dot(h1.astype(jnp.bfloat16), w2_ref[...],
                 preferred_element_type=jnp.float32) + b2_ref[...]

    h2_ref[...] = h2.astype(jnp.bfloat16)

    # Padded batch rows produce nonzero h2 (= relu(b1)@w2 + b2): mask them out
    # of the statistics.
    row0 = pl.program_id(0) * tile_rows
    rows = jax.lax.broadcasted_iota(jnp.int32, h2.shape, 0) + row0
    mask = (rows < valid_rows).astype(jnp.float32)
    h2m = h2 * mask
    sum_ref[...] = jnp.sum(h2m, axis=0, keepdims=True)[None]
    sq_ref[...] = jnp.sum(h2m * h2m, axis=0, keepdims=True)[None]


def _stage2_kernel(h2_ref, scale_ref, shift_ref, w3_ref, b3_ref, out_ref):
    """out = relu(h2*scale + shift) @ w3 + b3 for one batch tile (h2 is bf16)."""
    h2 = h2_ref[...].astype(jnp.float32)
    h3 = jnp.maximum(h2 * scale_ref[...] + shift_ref[...], 0.0)
    out = jnp.dot(h3.astype(jnp.bfloat16), w3_ref[...],
                  preferred_element_type=jnp.float32)
    out_ref[...] = out + b3_ref[...]


# ---------------------------------------------------------------------------
# Forward wrapper
# ---------------------------------------------------------------------------
def model_forward(x, prepped, classes):
    w1_p, b1_p, w2_p, b2_p, gamma_p, beta_p, w3_p, b3_p = prepped
    batch = x.shape[0]
    numm_p, sze_p = w1_p.shape
    classes_p = w3_p.shape[1]

    # ---------------- Fused single-call path (small batch) -------------------
    if batch <= FUSED_MAX_ROWS:
        tb = _round_up(batch, SUBLANE)
        x_p = _pad2(x, tb, numm_p, jnp.bfloat16)
        resident = (
            _nbytes((tb, numm_p), jnp.bfloat16)
            + _nbytes((numm_p, sze_p), jnp.bfloat16)
            + _nbytes((sze_p, sze_p), jnp.bfloat16)
            + _nbytes((sze_p, classes_p), jnp.bfloat16)
            + 5 * _nbytes((1, sze_p), jnp.float32)
            + _nbytes((1, classes_p), jnp.float32)
            + _nbytes((tb, classes_p), jnp.float32)
            + 2 * _nbytes((tb, sze_p), jnp.float32)  # in-kernel h1/h2 temporaries
        )
        out_p = pl.pallas_call(
            functools.partial(_fused_kernel, valid_rows=batch),
            out_shape=jax.ShapeDtypeStruct((tb, classes_p), jnp.float32),
            compiler_params=pltpu.CompilerParams(
                vmem_limit_bytes=_vmem_limit_bytes(resident)),
        )(x_p, w1_p, b1_p, w2_p, b2_p, gamma_p, beta_p, w3_p, b3_p)
        return out_p[:batch, :classes]

    # ---------------- Two-stage batch-tiled path ------------------------------
    tb, n_tiles = _derive_tb(batch)
    batch_p = tb * n_tiles
    x_p = _pad2(x, batch_p, numm_p, jnp.bfloat16)

    resident = (
        _nbytes((numm_p, sze_p), jnp.bfloat16)
        + _nbytes((sze_p, sze_p), jnp.bfloat16)
        + _nbytes((sze_p, classes_p), jnp.bfloat16)
        + 6 * _nbytes((1, sze_p), jnp.float32)
        + _nbytes((1, classes_p), jnp.float32)
    )
    streamed = (
        _nbytes((tb, numm_p), jnp.bfloat16)
        + _nbytes((tb, sze_p), jnp.bfloat16)
        + _nbytes((tb, classes_p), jnp.float32)
        + 2 * _nbytes((1, 1, sze_p), jnp.float32)
        + 2 * _nbytes((tb, sze_p), jnp.float32)  # in-kernel f32 temporaries
    )
    cparams = pltpu.CompilerParams(
        dimension_semantics=("parallel",),
        vmem_limit_bytes=_vmem_limit_bytes(resident, streamed))

    # Stage 1: h2 (bf16) + masked per-tile BN partial sums.
    h2_p, psum, psq = pl.pallas_call(
        functools.partial(_stage1_kernel, valid_rows=batch, tile_rows=tb),
        out_shape=(
            jax.ShapeDtypeStruct((batch_p, sze_p), jnp.bfloat16),
            jax.ShapeDtypeStruct((n_tiles, 1, sze_p), jnp.float32),
            jax.ShapeDtypeStruct((n_tiles, 1, sze_p), jnp.float32),
        ),
        grid=(n_tiles,),
        in_specs=[
            pl.BlockSpec((tb, numm_p), lambda i: (i, 0)),   # x tile (streamed)
            _const_spec((numm_p, sze_p)),                   # w1 (resident)
            _const_spec((1, sze_p)),                        # b1
            _const_spec((sze_p, sze_p)),                    # w2 (resident)
            _const_spec((1, sze_p)),                        # b2
        ],
        out_specs=(
            pl.BlockSpec((tb, sze_p), lambda i: (i, 0)),
            pl.BlockSpec((1, 1, sze_p), lambda i: (i, 0, 0)),
            pl.BlockSpec((1, 1, sze_p), lambda i: (i, 0, 0)),
        ),
        compiler_params=cparams,
    )(x_p, w1_p, b1_p, w2_p, b2_p)

    # Full-batch BN statistics from the tiny partial sums (one-pass formula).
    total = jnp.sum(psum, axis=0)                      # (1, sze_p)
    total_sq = jnp.sum(psq, axis=0)                    # (1, sze_p)
    mean = total / batch
    var = jnp.maximum(total_sq / batch - mean * mean, 0.0)   # biased, clamp fp noise
    scale = gamma_p * jax.lax.rsqrt(var + BN_EPS)      # padded cols: gamma=0 -> scale=0
    shift = beta_p - mean * scale

    # Stage 2: out = relu(h2*scale + shift) @ w3 + b3.
    out_p = pl.pallas_call(
        _stage2_kernel,
        out_shape=jax.ShapeDtypeStruct((batch_p, classes_p), jnp.float32),
        grid=(n_tiles,),
        in_specs=[
            pl.BlockSpec((tb, sze_p), lambda i: (i, 0)),    # h2 tile (bf16, streamed)
            _const_spec((1, sze_p)),                        # scale
            _const_spec((1, sze_p)),                        # shift
            _const_spec((sze_p, classes_p)),                # w3 (resident)
            _const_spec((1, classes_p)),                    # b3
        ],
        out_specs=pl.BlockSpec((tb, classes_p), lambda i: (i, 0)),
        compiler_params=cparams,
    )(h2_p, scale, shift, w3_p, b3_p)

    return out_p[:batch, :classes]


# ---------------------------------------------------------------------------
# Params / references
# ---------------------------------------------------------------------------
def init_params(key, numm, sze, classes):
    ks = jax.random.split(key, 6)
    w1 = jax.random.normal(ks[0], (numm, sze), jnp.float32) * 0.1
    b1 = jax.random.normal(ks[1], (1, sze), jnp.float32) * 0.1
    w2 = jax.random.normal(ks[2], (sze, sze), jnp.float32) * 0.1
    b2 = jax.random.normal(ks[3], (1, sze), jnp.float32) * 0.1
    gamma = jnp.ones((1, sze), jnp.float32)
    beta = jnp.zeros((1, sze), jnp.float32)
    w3 = jax.random.normal(ks[4], (sze, classes), jnp.float32) * 0.1
    b3 = jax.random.normal(ks[5], (1, classes), jnp.float32) * 0.1
    return (w1, b1, w2, b2, gamma, beta, w3, b3)


def _dot_bf16(a, b):
    return jnp.dot(a.astype(jnp.bfloat16), b.astype(jnp.bfloat16),
                   preferred_element_type=jnp.float32)


def reference_forward_f32(x, params):
    """Pure-f32 mirror of the PyTorch module (training-mode BatchNorm1d)."""
    w1, b1, w2, b2, gamma, beta, w3, b3 = params
    h1 = jnp.maximum(x @ w1 + b1, 0.0)
    h2 = h1 @ w2 + b2
    mean = jnp.mean(h2, axis=0, keepdims=True)
    var = jnp.mean((h2 - mean) ** 2, axis=0, keepdims=True)
    h3 = jnp.maximum((h2 - mean) * jax.lax.rsqrt(var + BN_EPS) * gamma + beta, 0.0)
    return h3 @ w3 + b3


def reference_forward_matched_fused(x, params):
    """Numerics of the fused kernel: bf16 matmuls, f32 two-pass stats."""
    w1, b1, w2, b2, gamma, beta, w3, b3 = params
    h1 = jnp.maximum(_dot_bf16(x, w1) + b1, 0.0)
    h2 = _dot_bf16(h1, w2) + b2
    mean = jnp.mean(h2, axis=0, keepdims=True)
    var = jnp.mean(jnp.square(h2 - mean), axis=0, keepdims=True)
    scale = gamma * jax.lax.rsqrt(var + BN_EPS)
    shift = beta - mean * scale
    h3 = jnp.maximum(h2 * scale + shift, 0.0)
    return _dot_bf16(h3, w3) + b3


def reference_forward_matched_staged(x, params):
    """Numerics of the two-stage path: bf16 matmuls, one-pass stats from f32 h2,
    bf16 h2 fed into the BN/ReLU of stage 2."""
    w1, b1, w2, b2, gamma, beta, w3, b3 = params
    n = x.shape[0]
    h1 = jnp.maximum(_dot_bf16(x, w1) + b1, 0.0)
    h2 = _dot_bf16(h1, w2) + b2
    mean = jnp.sum(h2, axis=0, keepdims=True) / n
    var = jnp.maximum(jnp.sum(h2 * h2, axis=0, keepdims=True) / n - mean * mean, 0.0)
    scale = gamma * jax.lax.rsqrt(var + BN_EPS)
    shift = beta - mean * scale
    h2b = h2.astype(jnp.bfloat16).astype(jnp.float32)
    h3 = jnp.maximum(h2b * scale + shift, 0.0)
    return _dot_bf16(h3, w3) + b3


# ---------------------------------------------------------------------------
if __name__ == "__main__":
    key = jax.random.PRNGKey(0)
    k_x, k_p, k_x2 = jax.random.split(key, 3)

    # Small dims, deliberately NOT multiples of 8/128 so padding is exercised.
    numm, sze, classes = 48, 96, 10
    params = init_params(k_p, numm, sze, classes)
    prepped = prepare_params(params)          # one-time pad + bf16 cast

    fwd = jax.jit(model_forward, static_argnums=(2,))

    # ---- Small batch -> fused single-kernel path -----------------------------
    batch = 12
    x = jax.random.normal(k_x, (batch, numm), jnp.float32)
    out = jax.block_until_ready(fwd(x, prepped, classes))
    assert out.shape == (batch, classes)
    ref_m = reference_forward_matched_fused(x, params)
    assert jnp.allclose(out, ref_m, atol=2e-3, rtol=2e-3), (
        float(jnp.max(jnp.abs(out - ref_m))))
    ref_f = reference_forward_f32(x, params)
    assert jnp.allclose(out, ref_f, atol=1e-1, rtol=1e-1), (
        float(jnp.max(jnp.abs(out - ref_f))))

    # ---- Larger batch -> two-stage batch-tiled path (2 tiles, masked BN sums,
    #      bf16 inter-stage h2) ------------------------------------------------
    batch2 = 300
    x2 = jax.random.normal(k_x2, (batch2, numm), jnp.float32)
    out2 = jax.block_until_ready(fwd(x2, prepped, classes))
    assert out2.shape == (batch2, classes)
    ref2_m = reference_forward_matched_staged(x2, params)
    assert jnp.allclose(out2, ref2_m, atol=2e-3, rtol=2e-3), (
        float(jnp.max(jnp.abs(out2 - ref2_m))))
    ref2_f = reference_forward_f32(x2, params)
    assert jnp.allclose(out2, ref2_f, atol=1e-1, rtol=1e-1), (
        float(jnp.max(jnp.abs(out2 - ref2_f))))

    print("KERNEL_OK")
</pallas_src>

<mosaic_0001>
module attributes {stable_mosaic.version = 11 : i64} {
  func.func @_fused_kernel(%arg0: memref<16x128xbf16, #tpu.memory_space<vmem>>, %arg1: memref<128x128xbf16, #tpu.memory_space<vmem>>, %arg2: memref<1x128xf32, #tpu.memory_space<vmem>>, %arg3: memref<128x128xbf16, #tpu.memory_space<vmem>>, %arg4: memref<1x128xf32, #tpu.memory_space<vmem>>, %arg5: memref<1x128xf32, #tpu.memory_space<vmem>>, %arg6: memref<1x128xf32, #tpu.memory_space<vmem>>, %arg7: memref<128x128xbf16, #tpu.memory_space<vmem>>, %arg8: memref<1x128xf32, #tpu.memory_space<vmem>>, %arg9: memref<16x128xf32, #tpu.memory_space<vmem>>) attributes {dimension_semantics = [], scalar_prefetch = 0 : i64, scratch_operands = 0 : i64, tpu.core_type = #tpu.core_type<tc>} {
    %c0 = arith.constant 0 : index
    %c0_0 = arith.constant 0 : index
    %0 = vector.load %arg0[%c0, %c0_0] : memref<16x128xbf16, #tpu.memory_space<vmem>>, vector<16x128xbf16>
    %c0_1 = arith.constant 0 : index
    %c0_2 = arith.constant 0 : index
    %1 = vector.load %arg1[%c0_1, %c0_2] : memref<128x128xbf16, #tpu.memory_space<vmem>>, vector<128x128xbf16>
    %cst = arith.constant dense<0.000000e+00> : vector<16x128xf32>
    %2 = tpu.matmul %0, %1, %cst {dimension_numbers = #tpu.dot_dimension_numbers<[1], [0], [0], [1], [0, 0, 1, 1], [], []>} : vector<16x128xbf16>, vector<128x128xbf16>, vector<16x128xf32> -> vector<16x128xf32>
    %c0_3 = arith.constant 0 : index
    %c0_4 = arith.constant 0 : index
    %3 = vector.load %arg2[%c0_3, %c0_4] : memref<1x128xf32, #tpu.memory_space<vmem>>, vector<1x128xf32>
    %4 = vector.broadcast %3 : vector<1x128xf32> to vector<16x128xf32>
    %5 = arith.addf %2, %4 : vector<16x128xf32>
    %cst_5 = arith.constant 0.000000e+00 : f32
    %6 = vector.broadcast %cst_5 : f32 to vector<16x128xf32>
    %7 = arith.maximumf %5, %6 : vector<16x128xf32>
    %8 = arith.truncf %7 : vector<16x128xf32> to vector<16x128xbf16>
    %c0_6 = arith.constant 0 : index
    %c0_7 = arith.constant 0 : index
    %9 = vector.load %arg3[%c0_6, %c0_7] : memref<128x128xbf16, #tpu.memory_space<vmem>>, vector<128x128xbf16>
    %cst_8 = arith.constant dense<0.000000e+00> : vector<16x128xf32>
    %10 = tpu.matmul %8, %9, %cst_8 {dimension_numbers = #tpu.dot_dimension_numbers<[1], [0], [0], [1], [0, 0, 1, 1], [], []>} : vector<16x128xbf16>, vector<128x128xbf16>, vector<16x128xf32> -> vector<16x128xf32>
    %c0_9 = arith.constant 0 : index
    %c0_10 = arith.constant 0 : index
    %11 = vector.load %arg4[%c0_9, %c0_10] : memref<1x128xf32, #tpu.memory_space<vmem>>, vector<1x128xf32>
    %12 = vector.broadcast %11 : vector<1x128xf32> to vector<16x128xf32>
    %13 = arith.addf %10, %12 : vector<16x128xf32>
    %14 = tpu.iota {dimensions = array<i32: 0>} : vector<16x128xi32>
    %c12_i32 = arith.constant 12 : i32
    %15 = vector.broadcast %c12_i32 : i32 to vector<16x128xi32>
    %16 = arith.cmpi slt, %14, %15 : vector<16x128xi32>
    %17 = arith.extui %16 : vector<16x128xi1> to vector<16x128xi32>
    %18 = arith.sitofp %17 : vector<16x128xi32> to vector<16x128xf32>
    %19 = arith.mulf %13, %18 : vector<16x128xf32>
    %cst_11 = arith.constant dense<0.000000e+00> : vector<128xf32>
    %20 = vector.multi_reduction <add>, %19, %cst_11 [0] : vector<16x128xf32> to vector<128xf32>
    %21 = vector.shape_cast %20 : vector<128xf32> to vector<1x128xf32>
    %cst_12 = arith.constant 0.0833333358 : f32
    %22 = vector.broadcast %cst_12 : f32 to vector<1x128xf32>
    %23 = arith.mulf %21, %22 : vector<1x128xf32>
    %24 = vector.broadcast %23 : vector<1x128xf32> to vector<16x128xf32>
    %25 = arith.subf %13, %24 : vector<16x128xf32>
    %26 = arith.mulf %25, %18 : vector<16x128xf32>
    %27 = arith.mulf %26, %26 : vector<16x128xf32>
    %cst_13 = arith.constant dense<0.000000e+00> : vector<128xf32>
    %28 = vector.multi_reduction <add>, %27, %cst_13 [0] : vector<16x128xf32> to vector<128xf32>
    %29 = vector.shape_cast %28 : vector<128xf32> to vector<1x128xf32>
    %cst_14 = arith.constant 0.0833333358 : f32
    %30 = vector.broadcast %cst_14 : f32 to vector<1x128xf32>
    %31 = arith.mulf %29, %30 : vector<1x128xf32>
    %c0_15 = arith.constant 0 : index
    %c0_16 = arith.constant 0 : index
    %32 = vector.load %arg5[%c0_15, %c0_16] : memref<1x128xf32, #tpu.memory_space<vmem>>, vector<1x128xf32>
    %cst_17 = arith.constant 9.99999974E-6 : f32
    %33 = vector.broadcast %cst_17 : f32 to vector<1x128xf32>
    %34 = arith.addf %31, %33 : vector<1x128xf32>
    %35 = math.rsqrt %34 : vector<1x128xf32>
    %36 = arith.mulf %32, %35 : vector<1x128xf32>
    %c0_18 = arith.constant 0 : index
    %c0_19 = arith.constant 0 : index
    %37 = vector.load %arg6[%c0_18, %c0_19] : memref<1x128xf32, #tpu.memory_space<vmem>>, vector<1x128xf32>
    %38 = arith.mulf %23, %36 : vector<1x128xf32>
    %39 = arith.subf %37, %38 : vector<1x128xf32>
    %40 = vector.broadcast %36 : vector<1x128xf32> to vector<16x128xf32>
    %41 = arith.mulf %13, %40 : vector<16x128xf32>
    %42 = vector.broadcast %39 : vector<1x128xf32> to vector<16x128xf32>
    %43 = arith.addf %41, %42 : vector<16x128xf32>
    %cst_20 = arith.constant 0.000000e+00 : f32
    %44 = vector.broadcast %cst_20 : f32 to vector<16x128xf32>
    %45 = arith.maximumf %43, %44 : vector<16x128xf32>
    %46 = arith.truncf %45 : vector<16x128xf32> to vector<16x128xbf16>
    %c0_21 = arith.constant 0 : index
    %c0_22 = arith.constant 0 : index
    %47 = vector.load %arg7[%c0_21, %c0_22] : memref<128x128xbf16, #tpu.memory_space<vmem>>, vector<128x128xbf16>
    %cst_23 = arith.constant dense<0.000000e+00> : vector<16x128xf32>
    %48 = tpu.matmul %46, %47, %cst_23 {dimension_numbers = #tpu.dot_dimension_numbers<[1], [0], [0], [1], [0, 0, 1, 1], [], []>} : vector<16x128xbf16>, vector<128x128xbf16>, vector<16x128xf32> -> vector<16x128xf32>
    %c0_24 = arith.constant 0 : index
    %c0_25 = arith.constant 0 : index
    %49 = vector.load %arg8[%c0_24, %c0_25] : memref<1x128xf32, #tpu.memory_space<vmem>>, vector<1x128xf32>
    %50 = vector.broadcast %49 : vector<1x128xf32> to vector<16x128xf32>
    %51 = arith.addf %48, %50 : vector<16x128xf32>
    %c0_26 = arith.constant 0 : index
    %c0_27 = arith.constant 0 : index
    %52 = vector.load %arg9[%c0_26, %c0_27] : memref<16x128xf32, #tpu.memory_space<vmem>>, vector<16x128xf32>
    tpu.vector_store %arg9[%c0_26, %c0_27], %51 {strides = array<i32>} : memref<16x128xf32, #tpu.memory_space<vmem>>, vector<16x128xf32>,
    return
  }
}

</mosaic_0001>

<llo_original>
// kernel: model_forward.1
$region0: #{model_forward.1}
  #allocation0 [shape = 'u32[]', space=smem, size = 0x4, offset = 0x4, fixed_abs, tag = 'smem constant byte address 0x4 - core index']
  #allocation1 [shape = 'u32[144,128]{1,0:T(1,128)}', space=vmem, size = 0x12000, scoped, tag = 'internal scratch']
  %s0 = inlined_call_operand.vmem [shape: bf16[16,128], index: 0, kind: input, shape index: {}]
  %s1 = inlined_call_operand.hbm [shape: bf16[128,128], index: 1, kind: input, shape index: {}]
  %s2 = inlined_call_operand.vmem [shape: f32[1,128], index: 2, kind: input, shape index: {}]
  %s3 = inlined_call_operand.hbm [shape: bf16[128,128], index: 3, kind: input, shape index: {}]
  %s4 = inlined_call_operand.vmem [shape: f32[1,128], index: 4, kind: input, shape index: {}]
  %s5 = inlined_call_operand.vmem [shape: f32[1,128], index: 5, kind: input, shape index: {}]
  %s6 = inlined_call_operand.vmem [shape: f32[1,128], index: 6, kind: input, shape index: {}]
  %s7 = inlined_call_operand.hbm [shape: bf16[128,128], index: 7, kind: input, shape index: {}]
  %s8 = inlined_call_operand.vmem [shape: f32[1,128], index: 8, kind: input, shape index: {}]
  %s9 = inlined_call_operand.hbm [shape: f32[16,128], index: 9, kind: output, shape index: {}]
  %s10 = sld [smem:[#allocation0]]
  $region58: #{model_forward.1} parent=0
    _
  %s12 = ssub.s32 1, %s10
  %s13 = scalar_select 0, %s12, %s10
  $region1: #{model_forward.1} parent=0
    #allocation2 [shape = 'u8[32768]{0}', space=vmem, size = 0x8000, scoped, tag = 'input window, operand 1, single buffered']
    #allocation3 [shape = 's32[1]{0}', space=sflag, size = 0x4, scoped, tag = 'scoped memory for model_forward.1']
    #allocation4 [shape = 's32[1]{0}', space=sflag, size = 0x4, scoped, tag = 'scoped memory for model_forward.1']
    #allocation5 [shape = 'u8[32768]{0}', space=vmem, size = 0x8000, scoped, tag = 'input window, operand 3, single buffered']
    #allocation6 [shape = 's32[1]{0}', space=sflag, size = 0x4, scoped, tag = 'scoped memory for model_forward.1']
    #allocation7 [shape = 'u8[32768]{0}', space=vmem, size = 0x8000, scoped, tag = 'input window, operand 7, single buffered']
    #allocation8 [shape = 'u8[8192]{0}', space=vmem, size = 0x2000, scoped, tag = 'output window, operand 0, single buffered']
    %14 = vsyncpa [#allocation3], 0
    %15 = vsyncpa [#allocation6], 0
    %16 = vsyncpa [#allocation4], 0
    // Predicated region
    $region2: #{model_forward.1} parent=1 // pred_check
      _
    $region3: #{model_forward.1} parent=1 // pred_check_branch
      %18 = sbr.rel (0) target = $region5
    $region4: #{model_forward.1} parent=1 // pred_region
      _
    $region5: #{model_forward.1} parent=1 // pred_fallthru
      _
    // Predicated region
    $region6: #{model_forward.1} parent=1 // pred_check
      _
    $region7: #{model_forward.1} parent=1 // pred_check_branch
      %20 = sbr.rel (0) target = $region9
    $region8: #{model_forward.1} parent=1 // pred_region
      %s22 = ssub.s32 1024, 1024
      %23 = vsyncadd [#allocation3], %s22
      %s24 = sshll.u32 [#allocation2], 4
      %s25 = int_to_ptr.vmem [resolvable:$true] %s24
      %30 = dma.hbm_to_vmem [thread:$0]  %s1, 1024, %s25, [#allocation3], 64, 64, 4
    $region9: #{model_forward.1} parent=1 // pred_fallthru
      _
    // Predicated region
    $region10: #{model_forward.1} parent=1 // pred_check
      _
    $region11: #{model_forward.1} parent=1 // pred_check_branch
      %32 = sbr.rel (0) target = $region13
    $region12: #{model_forward.1} parent=1 // pred_region
      _
    $region13: #{model_forward.1} parent=1 // pred_fallthru
      _
    // Predicated region
    $region14: #{model_forward.1} parent=1 // pred_check
      _
    $region15: #{model_forward.1} parent=1 // pred_check_branch
      %34 = sbr.rel (0) target = $region17
    $region16: #{model_forward.1} parent=1 // pred_region
      %s36 = ssub.s32 1024, 1024
      %37 = vsyncadd [#allocation6], %s36
      %s38 = sshll.u32 [#allocation5], 4
      %s39 = int_to_ptr.vmem [resolvable:$true] %s38
      %44 = dma.hbm_to_vmem [thread:$0]  %s3, 1024, %s39, [#allocation6], 64, 64, 4
    $region17: #{model_forward.1} parent=1 // pred_fallthru
      _
    // Predicated region
    $region18: #{model_forward.1} parent=1 // pred_check
      _
    $region19: #{model_forward.1} parent=1 // pred_check_branch
      %46 = sbr.rel (0) target = $region21
    $region20: #{model_forward.1} parent=1 // pred_region
      _
    $region21: #{model_forward.1} parent=1 // pred_fallthru
      _
    // Predicated region
    $region22: #{model_forward.1} parent=1 // pred_check
      _
    $region23: #{model_forward.1} parent=1 // pred_check_branch
      %48 = sbr.rel (0) target = $region25
    $region24: #{model_forward.1} parent=1 // pred_region
      _
    $region25: #{model_forward.1} parent=1 // pred_fallthru
      _
    // Predicated region
    $region26: #{model_forward.1} parent=1 // pred_check
      _
    $region27: #{model_forward.1} parent=1 // pred_check_branch
      %50 = sbr.rel (0) target = $region29
    $region28: #{model_forward.1} parent=1 // pred_region
      _
    $region29: #{model_forward.1} parent=1 // pred_fallthru
      _
    // Predicated region
    $region30: #{model_forward.1} parent=1 // pred_check
      _
    $region31: #{model_forward.1} parent=1 // pred_check_branch
      %52 = sbr.rel (0) target = $region33
    $region32: #{model_forward.1} parent=1 // pred_region
      %s54 = ssub.s32 1024, 1024
      %55 = vsyncadd [#allocation6], %s54
      %s56 = sshll.u32 [#allocation7], 4
      %s57 = int_to_ptr.vmem [resolvable:$true] %s56
      %62 = dma.hbm_to_vmem [thread:$0]  %s7, 1024, %s57, [#allocation6], 64, 64, 4
    $region33: #{model_forward.1} parent=1 // pred_fallthru
      _
    // Predicated region
    $region34: #{model_forward.1} parent=1 // pred_check
      _
    $region35: #{model_forward.1} parent=1 // pred_check_branch
      %64 = sbr.rel (0) target = $region37
    $region36: #{model_forward.1} parent=1 // pred_region
      _
    $region37: #{model_forward.1} parent=1 // pred_fallthru
      _
    // Predicated region
    $region38: #{model_forward.1} parent=1 // pred_check
      _
    $region39: #{model_forward.1} parent=1 // pred_check_branch
      %66 = sbr.rel (0) target = $region41
    $region40: #{model_forward.1} parent=1 // pred_region
      %67 = dma.done [#allocation3], 1024
    $region41: #{model_forward.1} parent=1 // pred_fallthru
      _
    // Predicated region
    $region42: #{model_forward.1} parent=1 // pred_check
      _
    $region43: #{model_forward.1} parent=1 // pred_check_branch
      %69 = sbr.rel (0) target = $region45
    $region44: #{model_forward.1} parent=1 // pred_region
      %70 = dma.done [#allocation6], 1024
    $region45: #{model_forward.1} parent=1 // pred_fallthru
      _
    // Predicated region
    $region46: #{model_forward.1} parent=1 // pred_check
      _
    $region47: #{model_forward.1} parent=1 // pred_check_branch
      %72 = sbr.rel (0) target = $region49
    $region48: #{model_forward.1} parent=1 // pred_region
      %73 = dma.done [#allocation6], 1024
    $region49: #{model_forward.1} parent=1 // pred_fallthru
      _
    %v75 = vld [vmem:[%s0] sm:$0xf]
    %v76 = vld [vmem:[%s0 + $0x4] sm:$0xf]
    %v77 = vld [vmem:[#allocation2] sm:$0xf]
    %v78 = vld [vmem:[#allocation2 + $0x4] sm:$0xf]
    %v79 = vld [vmem:[#allocation2 + $0x8] sm:$0xf]
    %v80 = vld [vmem:[#allocation2 + $0xc] sm:$0xf]
    %v81 = vld [vmem:[#allocation2 + $0x10] sm:$0xf]
    %v82 = vld [vmem:[#allocation2 + $0x14] sm:$0xf]
    %v83 = vld [vmem:[#allocation2 + $0x18] sm:$0xf]
    %v84 = vld [vmem:[#allocation2 + $0x1c] sm:$0xf]
    %v85 = vld [vmem:[#allocation2 + $0x20] sm:$0xf]
    %v86 = vld [vmem:[#allocation2 + $0x24] sm:$0xf]
    %v87 = vld [vmem:[#allocation2 + $0x28] sm:$0xf]
    %v88 = vld [vmem:[#allocation2 + $0x2c] sm:$0xf]
    %v89 = vld [vmem:[#allocation2 + $0x30] sm:$0xf]
    %v90 = vld [vmem:[#allocation2 + $0x34] sm:$0xf]
    %v91 = vld [vmem:[#allocation2 + $0x38] sm:$0xf]
    %v92 = vld [vmem:[#allocation2 + $0x3c] sm:$0xf]
    %v93 = vld [vmem:[%s2] sm:$0x1]
    %v95 = vlaneseq
    %v96 = vshrl.u32 %v95, 7
    %v97 = vsub.s32 0, %v96
    %v98 = vrot.slane %v93, %v97
    %v102 = vunpack.c.l.b16 %v75
    %v103 = vunpack.c.l.b16 %v76
    %v104 = vpack.c.b16 %v103, %v102
    %v122 = vunpack.c.l.b16 %v77
    %v123 = vunpack.c.l.b16 %v78
    %v124 = vunpack.c.l.b16 %v79
    %v125 = vunpack.c.l.b16 %v80
    %v126 = vunpack.c.l.b16 %v81
    %v127 = vunpack.c.l.b16 %v82
    %v128 = vunpack.c.l.b16 %v83
    %v129 = vunpack.c.l.b16 %v84
    %v130 = vunpack.c.l.b16 %v85
    %v131 = vunpack.c.l.b16 %v86
    %v132 = vunpack.c.l.b16 %v87
    %v133 = vunpack.c.l.b16 %v88
    %v134 = vunpack.c.l.b16 %v89
    %v135 = vunpack.c.l.b16 %v90
    %v136 = vunpack.c.l.b16 %v91
    %v137 = vunpack.c.l.b16 %v92
    %v138 = vpack.c.b16 %v123, %v122
    %v139 = vpack.c.b16 %v125, %v124
    %v140 = vpack.c.b16 %v127, %v126
    %v141 = vpack.c.b16 %v129, %v128
    %v142 = vpack.c.b16 %v131, %v130
    %v143 = vpack.c.b16 %v133, %v132
    %v144 = vpack.c.b16 %v135, %v134
    %v145 = vpack.c.b16 %v137, %v136
    %154 = vmatprep.subr.bf16.mxu0 0
    %155 = vmatpush1.bf16.msra.mxu0 %v145
    %156 = vmatprep.subr.bf16.mxu0 0
    %157 = vmatpush1.bf16.msra.mxu0 %v144
    %158 = vmatprep.subr.bf16.mxu0 0
    %159 = vmatpush1.bf16.msra.mxu0 %v143
    %160 = vmatprep.subr.bf16.mxu0 0
    %161 = vmatpush1.bf16.msra.mxu0 %v142
    %162 = vmatprep.subr.bf16.mxu0 0
    %163 = vmatpush1.bf16.msra.mxu0 %v141
    %164 = vmatprep.subr.bf16.mxu0 0
    %165 = vmatpush1.bf16.msra.mxu0 %v140
    %166 = vmatprep.subr.bf16.mxu0 0
    %167 = vmatpush1.bf16.msra.mxu0 %v139
    %168 = vmatprep.subr.bf16.mxu0 0
    %169 = vmatpush1.bf16.msra.mxu0 %v138
    %170 = vmatprep.subr.bf16.mxu0 0
    %171 = vmatpush2.bf16.msra.mxu0 0
    %172 = vmatprep.subr.bf16.mxu0 0
    %173 = vmatpush2.bf16.msra.mxu0 0
    %174 = vmatprep.subr.bf16.mxu0 0
    %175 = vmatpush2.bf16.msra.mxu0 0
    %176 = vmatprep.subr.bf16.mxu0 0
    %177 = vmatpush2.bf16.msra.mxu0 0
    %178 = vmatprep.subr.bf16.mxu0 0
    %179 = vmatpush2.bf16.msra.mxu0 0
    %180 = vmatprep.subr.bf16.mxu0 0
    %181 = vmatpush2.bf16.msra.mxu0 0
    %182 = vmatprep.subr.bf16.mxu0 0
    %183 = vmatpush2.bf16.msra.mxu0 0
    %184 = vmatprep.subr.bf16.mxu0 0
    %185 = vmatpush2.bf16.msra.mxu0 0
    %186 = vmatprep.mubr.bf16.mxu0 0
    %187 = vmatmul.mubr.bf16.gmra.mxu0 %v104
    %v188 = vpop.f32.mrf.mxu0
    %v189 = vadd.f32 %v98, %v188
    %v190 = vpop.f32.mrf.mxu0
    %v191 = vpop.f32.mrf.mxu0
    %v192 = vadd.f32 %v98, %v191
    %v193 = vpop.f32.mrf.mxu0
    %194 = vdwg.mxu0
    %v195 = vmax.f32 %v189, 0.0
    %v196 = vmax.f32 %v192, 0.0
    %v197 = vpack.c.bf16 %v196, %v195
    %v198 = vld [vmem:[#allocation5] sm:$0xf]
    %v199 = vld [vmem:[#allocation5 + $0x4] sm:$0xf]
    %v200 = vld [vmem:[#allocation5 + $0x8] sm:$0xf]
    %v201 = vld [vmem:[#allocation5 + $0xc] sm:$0xf]
    %v202 = vld [vmem:[#allocation5 + $0x10] sm:$0xf]
    %v203 = vld [vmem:[#allocation5 + $0x14] sm:$0xf]
    %v204 = vld [vmem:[#allocation5 + $0x18] sm:$0xf]
    %v205 = vld [vmem:[#allocation5 + $0x1c] sm:$0xf]
    %v206 = vld [vmem:[#allocation5 + $0x20] sm:$0xf]
    %v207 = vld [vmem:[#allocation5 + $0x24] sm:$0xf]
    %v208 = vld [vmem:[#allocation5 + $0x28] sm:$0xf]
    %v209 = vld [vmem:[#allocation5 + $0x2c] sm:$0xf]
    %v210 = vld [vmem:[#allocation5 + $0x30] sm:$0xf]
    %v211 = vld [vmem:[#allocation5 + $0x34] sm:$0xf]
    %v212 = vld [vmem:[#allocation5 + $0x38] sm:$0xf]
    %v213 = vld [vmem:[#allocation5 + $0x3c] sm:$0xf]
    %v214 = vld [vmem:[%s4] sm:$0x1]
    %v216 = vlaneseq
    %v217 = vshrl.u32 %v216, 7
    %v218 = vsub.s32 0, %v217
    %v219 = vrot.slane %v214, %v218
    %v237 = vunpack.c.l.b16 %v198
    %v238 = vunpack.c.l.b16 %v199
    %v239 = vunpack.c.l.b16 %v200
    %v240 = vunpack.c.l.b16 %v201
    %v241 = vunpack.c.l.b16 %v202
    %v242 = vunpack.c.l.b16 %v203
    %v243 = vunpack.c.l.b16 %v204
    %v244 = vunpack.c.l.b16 %v205
    %v245 = vunpack.c.l.b16 %v206
    %v246 = vunpack.c.l.b16 %v207
    %v247 = vunpack.c.l.b16 %v208
    %v248 = vunpack.c.l.b16 %v209
    %v249 = vunpack.c.l.b16 %v210
    %v250 = vunpack.c.l.b16 %v211
    %v251 = vunpack.c.l.b16 %v212
    %v252 = vunpack.c.l.b16 %v213
    %v253 = vpack.c.b16 %v238, %v237
    %v254 = vpack.c.b16 %v240, %v239
    %v255 = vpack.c.b16 %v242, %v241
    %v256 = vpack.c.b16 %v244, %v243
    %v257 = vpack.c.b16 %v246, %v245
    %v258 = vpack.c.b16 %v248, %v247
    %v259 = vpack.c.b16 %v250, %v249
    %v260 = vpack.c.b16 %v252, %v251
    %269 = vmatprep.subr.bf16.mxu0 0
    %270 = vmatpush1.bf16.msra.mxu0 %v260
    %271 = vmatprep.subr.bf16.mxu0 0
    %272 = vmatpush1.bf16.msra.mxu0 %v259
    %273 = vmatprep.subr.bf16.mxu0 0
    %274 = vmatpush1.bf16.msra.mxu0 %v258
    %275 = vmatprep.subr.bf16.mxu0 0
    %276 = vmatpush1.bf16.msra.mxu0 %v257
    %277 = vmatprep.subr.bf16.mxu0 0
    %278 = vmatpush1.bf16.msra.mxu0 %v256
    %279 = vmatprep.subr.bf16.mxu0 0
    %280 = vmatpush1.bf16.msra.mxu0 %v255
    %281 = vmatprep.subr.bf16.mxu0 0
    %282 = vmatpush1.bf16.msra.mxu0 %v254
    %283 = vmatprep.subr.bf16.mxu0 0
    %284 = vmatpush1.bf16.msra.mxu0 %v253
    %285 = vmatprep.subr.bf16.mxu0 0
    %286 = vmatpush2.bf16.msra.mxu0 0
    %287 = vmatprep.subr.bf16.mxu0 0
    %288 = vmatpush2.bf16.msra.mxu0 0
    %289 = vmatprep.subr.bf16.mxu0 0
    %290 = vmatpush2.bf16.msra.mxu0 0
    %291 = vmatprep.subr.bf16.mxu0 0
    %292 = vmatpush2.bf16.msra.mxu0 0
    %293 = vmatprep.subr.bf16.mxu0 0
    %294 = vmatpush2.bf16.msra.mxu0 0
    %295 = vmatprep.subr.bf16.mxu0 0
    %296 = vmatpush2.bf16.msra.mxu0 0
    %297 = vmatprep.subr.bf16.mxu0 0
    %298 = vmatpush2.bf16.msra.mxu0 0
    %299 = vmatprep.subr.bf16.mxu0 0
    %300 = vmatpush2.bf16.msra.mxu0 0
    %301 = vmatprep.mubr.bf16.mxu0 0
    %302 = vmatmul.mubr.bf16.gmra.mxu0 %v197
    %v303 = vpop.f32.mrf.mxu0
    %v304 = vadd.f32 %v219, %v303
    %v305 = vpop.f32.mrf.mxu0
    %v306 = vpop.f32.mrf.mxu0
    %v307 = vadd.f32 %v219, %v306
    %v308 = vpop.f32.mrf.mxu0
    %309 = vdwg.mxu0
    %v310 = vlaneseq
    %v311 = vshrl.u32 %v310, 7
    %v312 = vadd.s32 %v311, 8
    %vm313 = vcmp.lt.s32.totalorder %v311, 12
    %vm314 = vcmp.lt.s32.totalorder %v312, 12
    %v315 = vsel %vm313, 1, 0
    %v316 = vsel %vm314, 1, 0
    %v317 = vcvt.s32.f32 %v315
    %v318 = vcvt.s32.f32 %v316
    %v319 = vmul.f32 %v304, %v317
    %v320 = vmul.f32 %v307, %v318
    %v321 = vadd.f32 %v319, %v320
    %v322 = vrot.slane %v321, 4
    %v323 = vadd.f32 %v321, %v322
    %v324 = vrot.slane %v323, 2
    %v325 = vadd.f32 %v323, %v324
    %v326 = vrot.slane %v325, 1
    %v327 = vadd.f32 %v325, %v326
    %v328 = vmul.f32 %v327, 0.083333336
    %v329 = vsub.f32 %v304, %v328
    %v330 = vsub.f32 %v307, %v328
    %v331 = vmul.f32 %v329, %v317
    %v332 = vmul.f32 %v330, %v318
    %v333 = vmul.f32 %v331, %v331
    %v334 = vmul.f32 %v332, %v332
    %v335 = vadd.f32 %v333, %v334
    %v336 = vrot.slane %v335, 4
    %v337 = vadd.f32 %v335, %v336
    %v338 = vrot.slane %v337, 2
    %v339 = vadd.f32 %v337, %v338
    %v340 = vrot.slane %v339, 1
    %v341 = vadd.f32 %v339, %v340
    %v342 = vmul.f32 %v341, 0.083333336
    %v343 = vld [vmem:[%s5] sm:$0x1]
    %v344 = vadd.f32 %v342, 1e-05
    %v345 = vrsqrt.pop %v344
    %v346 = vmul.f32 %v343, %v345
    %v347 = vld [vmem:[%s6] sm:$0x1]
    %v348 = vmul.f32 %v328, %v346
    %v349 = vsub.f32 %v347, %v348
    %v351 = vlaneseq
    %v352 = vshrl.u32 %v351, 7
    %v353 = vsub.s32 0, %v352
    %v354 = vrot.slane %v346, %v353
    %v356 = vmul.f32 %v304, %v354
    %v357 = vmul.f32 %v307, %v354
    %v359 = vlaneseq
    %v360 = vshrl.u32 %v359, 7
    %v361 = vsub.s32 0, %v360
    %v362 = vrot.slane %v349, %v361
    %v364 = vadd.f32 %v356, %v362
    %v365 = vadd.f32 %v357, %v362
    %v366 = vmax.f32 %v364, 0.0
    %v367 = vmax.f32 %v365, 0.0
    %v368 = vpack.c.bf16 %v367, %v366
    %v369 = vld [vmem:[#allocation7] sm:$0xf]
    %v370 = vld [vmem:[#allocation7 + $0x4] sm:$0xf]
    %v371 = vld [vmem:[#allocation7 + $0x8] sm:$0xf]
    %v372 = vld [vmem:[#allocation7 + $0xc] sm:$0xf]
    %v373 = vld [vmem:[#allocation7 + $0x10] sm:$0xf]
    %v374 = vld [vmem:[#allocation7 + $0x14] sm:$0xf]
    %v375 = vld [vmem:[#allocation7 + $0x18] sm:$0xf]
    %v376 = vld [vmem:[#allocation7 + $0x1c] sm:$0xf]
    %v377 = vld [vmem:[#allocation7 + $0x20] sm:$0xf]
    %v378 = vld [vmem:[#allocation7 + $0x24] sm:$0xf]
    %v379 = vld [vmem:[#allocation7 + $0x28] sm:$0xf]
    %v380 = vld [vmem:[#allocation7 + $0x2c] sm:$0xf]
    %v381 = vld [vmem:[#allocation7 + $0x30] sm:$0xf]
    %v382 = vld [vmem:[#allocation7 + $0x34] sm:$0xf]
    %v383 = vld [vmem:[#allocation7 + $0x38] sm:$0xf]
    %v384 = vld [vmem:[#allocation7 + $0x3c] sm:$0xf]
    %v385 = vld [vmem:[%s8] sm:$0x1]
    %v387 = vlaneseq
    %v388 = vshrl.u32 %v387, 7
    %v389 = vsub.s32 0, %v388
    %v390 = vrot.slane %v385, %v389
    %v408 = vunpack.c.l.b16 %v369
    %v409 = vunpack.c.l.b16 %v370
    %v410 = vunpack.c.l.b16 %v371
    %v411 = vunpack.c.l.b16 %v372
    %v412 = vunpack.c.l.b16 %v373
    %v413 = vunpack.c.l.b16 %v374
    %v414 = vunpack.c.l.b16 %v375
    %v415 = vunpack.c.l.b16 %v376
    %v416 = vunpack.c.l.b16 %v377
    %v417 = vunpack.c.l.b16 %v378
    %v418 = vunpack.c.l.b16 %v379
    %v419 = vunpack.c.l.b16 %v380
    %v420 = vunpack.c.l.b16 %v381
    %v421 = vunpack.c.l.b16 %v382
    %v422 = vunpack.c.l.b16 %v383
    %v423 = vunpack.c.l.b16 %v384
    %v424 = vpack.c.b16 %v409, %v408
    %v425 = vpack.c.b16 %v411, %v410
    %v426 = vpack.c.b16 %v413, %v412
    %v427 = vpack.c.b16 %v415, %v414
    %v428 = vpack.c.b16 %v417, %v416
    %v429 = vpack.c.b16 %v419, %v418
    %v430 = vpack.c.b16 %v421, %v420
    %v431 = vpack.c.b16 %v423, %v422
    %440 = vmatprep.subr.bf16.mxu0 0
    %441 = vmatpush1.bf16.msra.mxu0 %v431
    %442 = vmatprep.subr.bf16.mxu0 0
    %443 = vmatpush1.bf16.msra.mxu0 %v430
    %444 = vmatprep.subr.bf16.mxu0 0
    %445 = vmatpush1.bf16.msra.mxu0 %v429
    %446 = vmatprep.subr.bf16.mxu0 0
    %447 = vmatpush1.bf16.msra.mxu0 %v428
    %448 = vmatprep.subr.bf16.mxu0 0
    %449 = vmatpush1.bf16.msra.mxu0 %v427
    %450 = vmatprep.subr.bf16.mxu0 0
    %451 = vmatpush1.bf16.msra.mxu0 %v426
    %452 = vmatprep.subr.bf16.mxu0 0
    %453 = vmatpush1.bf16.msra.mxu0 %v425
    %454 = vmatprep.subr.bf16.mxu0 0
    %455 = vmatpush1.bf16.msra.mxu0 %v424
    %456 = vmatprep.subr.bf16.mxu0 0
    %457 = vmatpush2.bf16.msra.mxu0 0
    %458 = vmatprep.subr.bf16.mxu0 0
    %459 = vmatpush2.bf16.msra.mxu0 0
    %460 = vmatprep.subr.bf16.mxu0 0
    %461 = vmatpush2.bf16.msra.mxu0 0
    %462 = vmatprep.subr.bf16.mxu0 0
    %463 = vmatpush2.bf16.msra.mxu0 0
    %464 = vmatprep.subr.bf16.mxu0 0
    %465 = vmatpush2.bf16.msra.mxu0 0
    %466 = vmatprep.subr.bf16.mxu0 0
    %467 = vmatpush2.bf16.msra.mxu0 0
    %468 = vmatprep.subr.bf16.mxu0 0
    %469 = vmatpush2.bf16.msra.mxu0 0
    %470 = vmatprep.subr.bf16.mxu0 0
    %471 = vmatpush2.bf16.msra.mxu0 0
    %472 = vmatprep.mubr.bf16.mxu0 0
    %473 = vmatmul.mubr.bf16.gmra.mxu0 %v368
    %v474 = vpop.f32.mrf.mxu0
    %v475 = vadd.f32 %v390, %v474
    %v476 = vpop.f32.mrf.mxu0
    %v477 = vpop.f32.mrf.mxu0
    %v478 = vadd.f32 %v390, %v477
    %v479 = vpop.f32.mrf.mxu0
    %480 = vdwg.mxu0
    %481 = vst [vmem:[#allocation8] sm:$0xff] %v475
    %482 = vst [vmem:[#allocation8 + $0x8] sm:$0xff] %v478
    // Predicated region
    $region50: #{model_forward.1} parent=1 // pred_check
      _
    $region51: #{model_forward.1} parent=1 // pred_check_branch
      %484 = sbr.rel (0) target = $region53
    $region52: #{model_forward.1} parent=1 // pred_region
      %s486 = ssub.s32 256, 256
      %487 = vsyncadd [#allocation4], %s486
      %s488 = sshll.u32 [#allocation8], 4
      %s489 = int_to_ptr.vmem [resolvable:$true] %s488
      %494 = dma.vmem_to_hbm [thread:$0]  %s489, 256, %s9, [#allocation4], 128, 128, 8
    $region53: #{model_forward.1} parent=1 // pred_fallthru
      _
    // Predicated region
    $region54: #{model_forward.1} parent=1 // pred_check
      _
    $region55: #{model_forward.1} parent=1 // pred_check_branch
      %496 = sbr.rel (0) target = $region57
    $region56: #{model_forward.1} parent=1 // pred_region
      %497 = dma.done [#allocation4], 256
    $region57: #{model_forward.1} parent=1 // pred_fallthru
      _
    %498 = vsyncpa [#allocation3], 1
    %499 = vsyncpa [#allocation6], 1
    %500 = vsyncpa [#allocation4], 1

</llo_original>
